<compile_context>
chip_gen: v6e
topology: v6e:2x2x1
jax: 0.10.0
libtpu: 0.0.40
codegen_flags: <defaults>
</compile_context>

<pallas_src>
import jax
import jax.numpy as jnp
from jax import lax
from jax.experimental import pallas as pl
from jax.experimental.pallas import tpu as pltpu


def _round_up(x, m):
    return ((x + m - 1) // m) * m


def _vmem_budget_bytes():
    """~80% of this generation's physical VMEM (v5e/v6e: 128 MiB, v7x: 64 MiB).

    Falls back to 64 MiB (the smallest generation) if the query is
    unavailable, so the limit never exceeds physical VMEM anywhere.
    """
    cap = 64 * 1024 * 1024
    try:
        info = pltpu.get_tpu_info()
        cap = int(getattr(info, "vmem_capacity_bytes", cap) or cap)
    except Exception:
        pass
    return int(cap * 0.8)


def _make_prefix_mlp_kernel(compute_dtype, recompute_h):
    """out = relu(onehot(ids) @ table @ w1 + b1) @ w2 + b2, tiled (rows, cols)."""

    def _first_stage(ids_ref, tab_ref, w1_ref, b1_ref):
        tm = ids_ref.shape[0]
        v = tab_ref.shape[0]
        ids = ids_ref[...]                                      # (TM, 1) int32
        iota = lax.broadcasted_iota(jnp.int32, (tm, v), 1)
        onehot = jnp.where(iota == ids, 1.0, 0.0).astype(tab_ref.dtype)
        # Fused embedding gather: prompt table only has `length` rows, so the
        # lookup is a tiny MXU matmul (exact for 0/1 weights).
        x = jnp.dot(onehot, tab_ref[...], preferred_element_type=jnp.float32)
        h = jnp.dot(x.astype(w1_ref.dtype), w1_ref[...],
                    preferred_element_type=jnp.float32)
        h = jnp.maximum(h + b1_ref[...].astype(jnp.float32), 0.0)
        return h.astype(compute_dtype)

    if recompute_h:
        # No cross-O-tile state -> both grid axes "parallel" (v7x megacore).
        def kernel(ids_ref, tab_ref, w1_ref, b1_ref, w2_ref, b2_ref, o_ref):
            h = _first_stage(ids_ref, tab_ref, w1_ref, b1_ref)
            o = jnp.dot(h, w2_ref[...], preferred_element_type=jnp.float32)
            o_ref[...] = (o + b2_ref[...].astype(jnp.float32)).astype(o_ref.dtype)
        return kernel

    # Cached-h variant for large E*P: compute h once per row tile (O-tile 0),
    # keep it in a compute-dtype VMEM scratch, reuse across remaining O tiles.
    def kernel(ids_ref, tab_ref, w1_ref, b1_ref, w2_ref, b2_ref, o_ref, h_ref):
        @pl.when(pl.program_id(1) == 0)
        def _():
            h_ref[...] = _first_stage(ids_ref, tab_ref, w1_ref, b1_ref)
        o = jnp.dot(h_ref[...], w2_ref[...], preferred_element_type=jnp.float32)
        o_ref[...] = (o + b2_ref[...].astype(jnp.float32)).astype(o_ref.dtype)

    return kernel


def init_prompt_encoder_params(key, *, type="prefix", length=8, projection=True,
                               embed_dim=32, proj_dim=64, layers=2,
                               vocab_size=100, dtype=jnp.float32):
    """Deterministic synthetic params mirroring PromptEncoder.__init__ shapes."""
    prompt_vocab_size = length if type == "prefix" else vocab_size
    out_dim = layers * 2 * embed_dim
    keys = jax.random.split(key, 5)
    params = {"prefix_projection": projection}
    if projection:
        params["embedding"] = jax.random.normal(
            keys[0], (prompt_vocab_size, embed_dim), dtype)
        params["w1"] = (jax.random.normal(keys[1], (embed_dim, proj_dim), dtype)
                        * (embed_dim ** -0.5))
        params["b1"] = jax.random.normal(keys[2], (1, proj_dim), dtype) * 0.01
        params["w2"] = (jax.random.normal(keys[3], (proj_dim, out_dim), dtype)
                        * (proj_dim ** -0.5))
        params["b2"] = jax.random.normal(keys[4], (1, out_dim), dtype) * 0.01
    else:
        # non-projection branch: embedding directly to layers*2*embed_dim
        params["embedding"] = jax.random.normal(
            keys[0], (prompt_vocab_size, out_dim), dtype)
    return params


def prepare_prompt_encoder(params, *, compute_dtype=jnp.float32, out_dtype=None,
                           max_tokens=1024, to_dma_target_bytes=2 << 20):
    """One-time per-model prep: cast/pad weights, pick tiles for this TPU gen."""
    if out_dtype is None:
        out_dtype = compute_dtype
    prep = {"prefix_projection": bool(params["prefix_projection"]),
            "compute_dtype": compute_dtype, "out_dtype": out_dtype}
    if not prep["prefix_projection"]:
        prep["embedding"] = params["embedding"]
        return prep

    cb = jnp.dtype(compute_dtype).itemsize
    ob = jnp.dtype(out_dtype).itemsize

    # Hoisted one-time weight cast (per-call casting would cost ~3x the
    # kernel's own w2 HBM traffic in the bf16 path).
    table = params["embedding"].astype(compute_dtype)
    w1 = params["w1"].astype(compute_dtype)
    b1 = params["b1"].astype(compute_dtype)
    w2 = params["w2"].astype(compute_dtype)
    b2 = params["b2"].astype(compute_dtype)

    V, E = table.shape
    P = w1.shape[1]
    O = w2.shape[1]

    V_pad = _round_up(V, 8)
    if V_pad != V:
        table = jnp.pad(table, ((0, V_pad - V), (0, 0)))

    # Row tile: full-vreg sublane pack for the compute dtype (f32:8, bf16:16,
    # 8-bit:32); grow up to 512 rows before splitting M.
    pack = max(8, 32 // cb)
    TM_cap = min(_round_up(max_tokens, pack), 512)

    # Output-column tile: derived from this generation's VMEM budget plus a
    # DMA-amortization target (>= ~2 MiB of w2 per grid step). Tiny problems
    # collapse to a single O tile.
    budget = _vmem_budget_bytes()
    o_pad128 = _round_up(O, 128)
    resident = (2 * (V_pad * E + E * P + P) + TM_cap * P) * cb + 2 * TM_cap * 4
    per_col = 2 * (P * cb + cb + TM_cap * ob)       # double-buffered w2/b2/out
    avail = max(budget - resident - (4 << 20), per_col * 128)
    to_vmem_max = max((avail // per_col) // 128 * 128, 128)
    to_dma = _round_up(max(to_dma_target_bytes // max(P * cb, 1), 128), 128)
    TO = max(128, min(to_dma, to_vmem_max, o_pad128))

    # Pad the wide output dim up to a multiple of TO (sliced off after the
    # call) so awkward layers*2*embed_dim values never force tiny tiles.
    O_final = _round_up(O, TO)
    if O_final != O:
        w2 = jnp.pad(w2, ((0, 0), (0, O_final - O)))
        b2 = jnp.pad(b2, ((0, 0), (0, O_final - O)))
    num_o = O_final // TO

    # Recompute h per O tile when the first GEMM is cheap vs. the per-tile
    # second GEMM (or there is only one O tile): no cross-O-tile state, so
    # both grid axes become megacore-parallel.
    recompute_h = (num_o == 1) or (2 * (E * P + V_pad * E) <= P * TO)

    prep.update(table=table, w1=w1, b1=b1, w2=w2, b2=b2, O=O, TO=TO,
                pack=pack, TM_cap=TM_cap, recompute_h=recompute_h,
                vmem_limit=int(budget))
    return prep


def _prefix_mlp_pallas(ids2d, prep, TM):
    table, w1, b1, w2, b2 = prep["table"], prep["w1"], prep["b1"], prep["w2"], prep["b2"]
    M_pad = ids2d.shape[0]
    V_pad, E = table.shape
    P = w1.shape[1]
    O_final = w2.shape[1]
    TO = prep["TO"]
    compute_dtype = prep["compute_dtype"]
    out_dtype = prep["out_dtype"]
    recompute_h = prep["recompute_h"]
    num_m = M_pad // TM
    num_o = O_final // TO
    cb = jnp.dtype(compute_dtype).itemsize
    ob = jnp.dtype(out_dtype).itemsize

    scratch = [] if recompute_h else [pltpu.VMEM((TM, P), compute_dtype)]
    dims = ("parallel", "parallel") if recompute_h else ("parallel", "arbitrary")

    first_reps = num_o if recompute_h else 1
    cost = pl.CostEstimate(
        flops=2 * M_pad * P * O_final
              + 2 * M_pad * (E * P + V_pad * E) * first_reps,
        transcendentals=0,
        # w2/b2 are re-streamed from HBM once per row tile.
        bytes_accessed=int(num_m * (P + 1) * O_final * cb
                           + (V_pad * E + E * P + P) * cb
                           + M_pad * 4 + M_pad * O_final * ob),
    )

    kernel = _make_prefix_mlp_kernel(compute_dtype, recompute_h)

    # NOTE: table/w1/b1 have constant index maps -> their DMAs are deduped
    # across grid steps (see TODO at top about single-buffering them).
    return pl.pallas_call(
        kernel,
        out_shape=jax.ShapeDtypeStruct((M_pad, O_final), out_dtype),
        grid_spec=pltpu.PrefetchScalarGridSpec(
            num_scalar_prefetch=0,
            grid=(num_m, num_o),
            in_specs=[
                pl.BlockSpec((TM, 1), lambda i, j: (i, 0)),      # prefix ids
                pl.BlockSpec((V_pad, E), lambda i, j: (0, 0)),   # prompt table
                pl.BlockSpec((E, P), lambda i, j: (0, 0)),       # w1 (resident)
                pl.BlockSpec((1, P), lambda i, j: (0, 0)),       # b1 (resident)
                pl.BlockSpec((P, TO), lambda i, j: (0, j)),      # w2 column tile
                pl.BlockSpec((1, TO), lambda i, j: (0, j)),      # b2 column tile
            ],
            out_specs=pl.BlockSpec((TM, TO), lambda i, j: (i, j)),
            scratch_shapes=scratch,
        ),
        compiler_params=pltpu.CompilerParams(
            dimension_semantics=dims,
            vmem_limit_bytes=int(prep["vmem_limit"]),
        ),
        cost_estimate=cost,
    )(ids2d, table, w1, b1, w2, b2)


def prompt_encoder_forward(prep, prefix):
    """prefix: int [B, L] -> past_key_values [B, L, layers*2*embed_dim]."""
    if not prep["prefix_projection"]:
        return jnp.take(prep["embedding"], prefix, axis=0)

    B, L = prefix.shape
    M = B * L
    pack = prep["pack"]
    TM = min(_round_up(M, pack), prep["TM_cap"])
    M_pad = _round_up(M, TM)
    ids = prefix.reshape(M).astype(jnp.int32)
    if M_pad != M:
        ids = jnp.pad(ids, (0, M_pad - M))
    ids2d = ids.reshape(M_pad, 1)

    out = _prefix_mlp_pallas(ids2d, prep, TM)
    return out[:M, :prep["O"]].reshape(B, L, prep["O"])


if __name__ == "__main__":
    key = jax.random.PRNGKey(0)
    k_params, k_prefix = jax.random.split(key)

    # small, forward-consistent shapes
    batch, length = 2, 8
    embed_dim, proj_dim, layers = 32, 64, 2

    params = init_prompt_encoder_params(
        k_params, type="prefix", length=length, projection=True,
        embed_dim=embed_dim, proj_dim=proj_dim, layers=layers, vocab_size=100)

    prefix = jax.random.randint(k_prefix, (batch, length), 0, length,
                                dtype=jnp.int32)

    # ---- f32 path: strict check against pure-JAX reference ---------------
    prep_f32 = prepare_prompt_encoder(params, compute_dtype=jnp.float32)
    out_f32 = jax.block_until_ready(prompt_encoder_forward(prep_f32, prefix))

    tok = jnp.take(params["embedding"], prefix, axis=0)
    ref = jnp.maximum(tok @ params["w1"] + params["b1"][0], 0.0)
    ref = ref @ params["w2"] + params["b2"][0]
    assert out_f32.shape == (batch, length, layers * 2 * embed_dim)
    assert jnp.allclose(out_f32, ref, atol=1e-4, rtol=1e-4)

    # ---- bf16 path: weights pre-cast once, f32 MXU accumulation ----------
    prep_bf16 = prepare_prompt_encoder(params, compute_dtype=jnp.bfloat16)
    out_bf16 = jax.block_until_ready(prompt_encoder_forward(prep_bf16, prefix))

    tok_b = tok.astype(jnp.bfloat16)
    h_b = jnp.maximum(
        jnp.dot(tok_b, params["w1"].astype(jnp.bfloat16),
                preferred_element_type=jnp.float32)
        + params["b1"][0].astype(jnp.bfloat16).astype(jnp.float32), 0.0)
    ref_b = (jnp.dot(h_b.astype(jnp.bfloat16),
                     params["w2"].astype(jnp.bfloat16),
                     preferred_element_type=jnp.float32)
             + params["b2"][0].astype(jnp.bfloat16).astype(jnp.float32))
    assert out_bf16.dtype == jnp.bfloat16
    assert out_bf16.shape == (batch, length, layers * 2 * embed_dim)
    assert jnp.allclose(out_bf16.astype(jnp.float32), ref_b,
                        atol=2e-2, rtol=2e-2)

    print("KERNEL_OK")
</pallas_src>

<mosaic_0001>
module attributes {stable_mosaic.version = 11 : i64} {
  func.func @kernel(%arg0: i32, %arg1: i32, %arg2: memref<16x1xi32, #tpu.memory_space<vmem>>, %arg3: memref<8x32xf32, #tpu.memory_space<vmem>>, %arg4: memref<32x64xf32, #tpu.memory_space<vmem>>, %arg5: memref<1x64xf32, #tpu.memory_space<vmem>>, %arg6: memref<64x128xf32, #tpu.memory_space<vmem>>, %arg7: memref<1x128xf32, #tpu.memory_space<vmem>>, %arg8: memref<16x128xf32, #tpu.memory_space<vmem>>) attributes {dimension_semantics = [#tpu.dimension_semantics<parallel>, #tpu.dimension_semantics<parallel>], iteration_bounds = array<i64: 1, 1>, scalar_prefetch = 0 : i64, scratch_operands = 0 : i64, tpu.core_type = #tpu.core_type<tc>, window_params = [{transform_indices = @transform_0, window_bounds = array<i64: 16, 1>}, {pipeline_mode = #tpu.pipeline_mode<synchronous>, transform_indices = @transform_1, window_bounds = array<i64: 8, 32>}, {pipeline_mode = #tpu.pipeline_mode<synchronous>, transform_indices = @transform_2, window_bounds = array<i64: 32, 64>}, {pipeline_mode = #tpu.pipeline_mode<synchronous>, transform_indices = @transform_3, window_bounds = array<i64: 1, 64>}, {transform_indices = @transform_4, window_bounds = array<i64: 64, 128>}, {transform_indices = @transform_5, window_bounds = array<i64: 1, 128>}, {transform_indices = @transform_6, window_bounds = array<i64: 16, 128>}]} {
    %c0 = arith.constant 0 : index
    %c0_0 = arith.constant 0 : index
    %0 = vector.load %arg2[%c0, %c0_0] : memref<16x1xi32, #tpu.memory_space<vmem>>, vector<16x1xi32>
    %1 = tpu.iota {dimensions = array<i32: 1>} : vector<16x8xi32>
    %2 = vector.broadcast %0 : vector<16x1xi32> to vector<16x8xi32>
    %3 = arith.cmpi eq, %1, %2 : vector<16x8xi32>
    %cst = arith.constant 1.000000e+00 : f32
    %cst_1 = arith.constant 0.000000e+00 : f32
    %4 = vector.broadcast %cst : f32 to vector<16x8xf32>
    %5 = vector.broadcast %cst_1 : f32 to vector<16x8xf32>
    %6 = arith.select %3, %4, %5 : vector<16x8xi1>, vector<16x8xf32>
    %c0_2 = arith.constant 0 : index
    %c0_3 = arith.constant 0 : index
    %7 = vector.load %arg3[%c0_2, %c0_3] : memref<8x32xf32, #tpu.memory_space<vmem>>, vector<8x32xf32>
    %cst_4 = arith.constant dense<0.000000e+00> : vector<16x32xf32>
    %8 = tpu.matmul %6, %7, %cst_4 {dimension_numbers = #tpu.dot_dimension_numbers<[1], [0], [0], [1], [0, 0, 1, 1], [], []>} : vector<16x8xf32>, vector<8x32xf32>, vector<16x32xf32> -> vector<16x32xf32>
    %c0_5 = arith.constant 0 : index
    %c0_6 = arith.constant 0 : index
    %9 = vector.load %arg4[%c0_5, %c0_6] : memref<32x64xf32, #tpu.memory_space<vmem>>, vector<32x64xf32>
    %cst_7 = arith.constant dense<0.000000e+00> : vector<16x64xf32>
    %10 = tpu.matmul %8, %9, %cst_7 {dimension_numbers = #tpu.dot_dimension_numbers<[1], [0], [0], [1], [0, 0, 1, 1], [], []>} : vector<16x32xf32>, vector<32x64xf32>, vector<16x64xf32> -> vector<16x64xf32>
    %c0_8 = arith.constant 0 : index
    %c0_9 = arith.constant 0 : index
    %11 = vector.load %arg5[%c0_8, %c0_9] : memref<1x64xf32, #tpu.memory_space<vmem>>, vector<1x64xf32>
    %12 = vector.broadcast %11 : vector<1x64xf32> to vector<16x64xf32>
    %13 = arith.addf %10, %12 : vector<16x64xf32>
    %cst_10 = arith.constant 0.000000e+00 : f32
    %14 = vector.broadcast %cst_10 : f32 to vector<16x64xf32>
    %15 = arith.maximumf %13, %14 : vector<16x64xf32>
    %c0_11 = arith.constant 0 : index
    %c0_12 = arith.constant 0 : index
    %16 = vector.load %arg6[%c0_11, %c0_12] : memref<64x128xf32, #tpu.memory_space<vmem>>, vector<64x128xf32>
    %cst_13 = arith.constant dense<0.000000e+00> : vector<16x128xf32>
    %17 = tpu.matmul %15, %16, %cst_13 {dimension_numbers = #tpu.dot_dimension_numbers<[1], [0], [0], [1], [0, 0, 1, 1], [], []>} : vector<16x64xf32>, vector<64x128xf32>, vector<16x128xf32> -> vector<16x128xf32>
    %c0_14 = arith.constant 0 : index
    %c0_15 = arith.constant 0 : index
    %18 = vector.load %arg7[%c0_14, %c0_15] : memref<1x128xf32, #tpu.memory_space<vmem>>, vector<1x128xf32>
    %19 = vector.broadcast %18 : vector<1x128xf32> to vector<16x128xf32>
    %20 = arith.addf %17, %19 : vector<16x128xf32>
    %c0_16 = arith.constant 0 : index
    %c0_17 = arith.constant 0 : index
    %21 = vector.load %arg8[%c0_16, %c0_17] : memref<16x128xf32, #tpu.memory_space<vmem>>, vector<16x128xf32>
    tpu.vector_store %arg8[%c0_16, %c0_17], %20 {strides = array<i32>} : memref<16x128xf32, #tpu.memory_space<vmem>>, vector<16x128xf32>,
    return
  }
  func.func @transform_0(%arg0: i32, %arg1: i32) -> (i32, i32) {
    %c0_i32 = arith.constant 0 : i32
    %c0_i32_0 = arith.constant 0 : i32
    return %arg0, %c0_i32 : i32, i32
  }
  func.func @transform_1(%arg0: i32, %arg1: i32) -> (i32, i32) {
    %c0_i32 = arith.constant 0 : i32
    %c0_i32_0 = arith.constant 0 : i32
    %c0_i32_1 = arith.constant 0 : i32
    return %c0_i32, %c0_i32_0 : i32, i32
  }
  func.func @transform_2(%arg0: i32, %arg1: i32) -> (i32, i32) {
    %c0_i32 = arith.constant 0 : i32
    %c0_i32_0 = arith.constant 0 : i32
    %c0_i32_1 = arith.constant 0 : i32
    return %c0_i32, %c0_i32_0 : i32, i32
  }
  func.func @transform_3(%arg0: i32, %arg1: i32) -> (i32, i32) {
    %c0_i32 = arith.constant 0 : i32
    %c0_i32_0 = arith.constant 0 : i32
    %c0_i32_1 = arith.constant 0 : i32
    return %c0_i32, %c0_i32_0 : i32, i32
  }
  func.func @transform_4(%arg0: i32, %arg1: i32) -> (i32, i32) {
    %c0_i32 = arith.constant 0 : i32
    %c0_i32_0 = arith.constant 0 : i32
    return %c0_i32, %arg1 : i32, i32
  }
  func.func @transform_5(%arg0: i32, %arg1: i32) -> (i32, i32) {
    %c0_i32 = arith.constant 0 : i32
    %c0_i32_0 = arith.constant 0 : i32
    return %c0_i32, %arg1 : i32, i32
  }
  func.func @transform_6(%arg0: i32, %arg1: i32) -> (i32, i32) {
    %c0_i32 = arith.constant 0 : i32
    return %arg0, %arg1 : i32, i32
  }
}

</mosaic_0001>

<llo_original>
// kernel: tpu_custom_call.1
$region0: #{tpu_custom_call.1}
  #allocation0 [shape = 'u32[]', space=smem, size = 0x4, offset = 0x4, fixed_abs, tag = 'smem constant byte address 0x4 - core index']
  #allocation1 [shape = 'u32[144,128]{1,0:T(1,128)}', space=vmem, size = 0x12000, scoped, tag = 'internal scratch']
  %s0 = inlined_call_operand.vmem [shape: s32[16,1], index: 0, kind: input, shape index: {}]
  %s1 = inlined_call_operand.vmem [shape: f32[8,32], index: 1, kind: input, shape index: {}]
  %s2 = inlined_call_operand.hbm [shape: f32[32,64], index: 2, kind: input, shape index: {}]
  %s3 = inlined_call_operand.vmem [shape: f32[1,64], index: 3, kind: input, shape index: {}]
  %s4 = inlined_call_operand.hbm [shape: f32[64,128], index: 4, kind: input, shape index: {}]
  %s5 = inlined_call_operand.vmem [shape: f32[1,128], index: 5, kind: input, shape index: {}]
  %s6 = inlined_call_operand.hbm [shape: f32[16,128], index: 6, kind: output, shape index: {}]
  %s7 = sld [smem:[#allocation0]]
  $region42: #{tpu_custom_call.1} parent=0
    _
  %s9 = ssub.s32 1, %s7
  %s10 = scalar_select 0, %s9, %s7
  $region1: #{tpu_custom_call.1} parent=0
    #allocation2 [shape = 'u8[16384]{0}', space=vmem, size = 0x4000, scoped, tag = 'input window, operand 2, single buffered']
    #allocation3 [shape = 's32[1]{0}', space=sflag, size = 0x4, scoped, tag = 'scoped memory for tpu_custom_call.1']
    #allocation4 [shape = 's32[1]{0}', space=sflag, size = 0x4, scoped, tag = 'scoped memory for tpu_custom_call.1']
    #allocation5 [shape = 'u8[32768]{0}', space=vmem, size = 0x8000, scoped, tag = 'input window, operand 4, single buffered']
    #allocation6 [shape = 's32[1]{0}', space=sflag, size = 0x4, scoped, tag = 'scoped memory for tpu_custom_call.1']
    #allocation7 [shape = 'u8[8192]{0}', space=vmem, size = 0x2000, scoped, tag = 'output window, operand 0, single buffered']
    %11 = vsyncpa [#allocation3], 0
    %12 = vsyncpa [#allocation6], 0
    %13 = vsyncpa [#allocation4], 0
    // Predicated region
    $region2: #{tpu_custom_call.1} parent=1 // pred_check
      _
    $region3: #{tpu_custom_call.1} parent=1 // pred_check_branch
      %15 = sbr.rel (0) target = $region5
    $region4: #{tpu_custom_call.1} parent=1 // pred_region
      _
    $region5: #{tpu_custom_call.1} parent=1 // pred_fallthru
      _
    // Predicated region
    $region6: #{tpu_custom_call.1} parent=1 // pred_check
      _
    $region7: #{tpu_custom_call.1} parent=1 // pred_check_branch
      %17 = sbr.rel (0) target = $region9
    $region8: #{tpu_custom_call.1} parent=1 // pred_region
      _
    $region9: #{tpu_custom_call.1} parent=1 // pred_fallthru
      _
    // Predicated region
    $region10: #{tpu_custom_call.1} parent=1 // pred_check
      _
    $region11: #{tpu_custom_call.1} parent=1 // pred_check_branch
      %19 = sbr.rel (0) target = $region13
    $region12: #{tpu_custom_call.1} parent=1 // pred_region
      %s21 = ssub.s32 512, 512
      %22 = vsyncadd [#allocation3], %s21
      %s23 = sshll.u32 [#allocation2], 4
      %s24 = int_to_ptr.vmem [resolvable:$true] %s23
      %29 = dma.hbm_to_vmem [thread:$0]  %s2, 512, %s24, [#allocation3], 128, 128, 8
    $region13: #{tpu_custom_call.1} parent=1 // pred_fallthru
      _
    // Predicated region
    $region14: #{tpu_custom_call.1} parent=1 // pred_check
      _
    $region15: #{tpu_custom_call.1} parent=1 // pred_check_branch
      %31 = sbr.rel (0) target = $region17
    $region16: #{tpu_custom_call.1} parent=1 // pred_region
      _
    $region17: #{tpu_custom_call.1} parent=1 // pred_fallthru
      _
    // Predicated region
    $region18: #{tpu_custom_call.1} parent=1 // pred_check
      _
    $region19: #{tpu_custom_call.1} parent=1 // pred_check_branch
      %33 = sbr.rel (0) target = $region21
    $region20: #{tpu_custom_call.1} parent=1 // pred_region
      %s35 = ssub.s32 1024, 1024
      %36 = vsyncadd [#allocation6], %s35
      %s37 = sshll.u32 [#allocation5], 4
      %s38 = int_to_ptr.vmem [resolvable:$true] %s37
      %43 = dma.hbm_to_vmem [thread:$0]  %s4, 1024, %s38, [#allocation6], 128, 128, 8
    $region21: #{tpu_custom_call.1} parent=1 // pred_fallthru
      _
    // Predicated region
    $region22: #{tpu_custom_call.1} parent=1 // pred_check
      _
    $region23: #{tpu_custom_call.1} parent=1 // pred_check_branch
      %45 = sbr.rel (0) target = $region25
    $region24: #{tpu_custom_call.1} parent=1 // pred_region
      _
    $region25: #{tpu_custom_call.1} parent=1 // pred_fallthru
      _
    // Predicated region
    $region26: #{tpu_custom_call.1} parent=1 // pred_check
      _
    $region27: #{tpu_custom_call.1} parent=1 // pred_check_branch
      %47 = sbr.rel (0) target = $region29
    $region28: #{tpu_custom_call.1} parent=1 // pred_region
      %48 = dma.done [#allocation3], 512
    $region29: #{tpu_custom_call.1} parent=1 // pred_fallthru
      _
    // Predicated region
    $region30: #{tpu_custom_call.1} parent=1 // pred_check
      _
    $region31: #{tpu_custom_call.1} parent=1 // pred_check_branch
      %50 = sbr.rel (0) target = $region33
    $region32: #{tpu_custom_call.1} parent=1 // pred_region
      %51 = dma.done [#allocation6], 1024
    $region33: #{tpu_custom_call.1} parent=1 // pred_fallthru
      _
    %v52 = vld [vmem:[%s0] sm:$0xff]
    %v53 = vld [vmem:[%s0 + $0x8] sm:$0xff]
    %v54 = vlaneseq
    %v55 = vand.u32 %v54, 127
    %56 = vset.pattern.permute.xlu0 0
    %57 = vperm.xlu0 %56, %v52
    %v58 = vpop.permute.xlu0 %57
    %59 = vset.pattern.permute.xlu0 0
    %60 = vperm.xlu0 %59, %v53
    %v61 = vpop.permute.xlu0 %60
    %vm62 = vcmp.eq.s32.totalorder %v55, %v58
    %vm63 = vcmp.eq.s32.totalorder %v55, %v61
    %v64 = vsel %vm62, 1.0, 0.0
    %v65 = vsel %vm63, 1.0, 0.0
    %v66 = vld [vmem:[%s1] sm:$0xff]
    %vm67 = vcmask 64512
    %v69 = vsel %vm67, %v64, 0
    %v72 = vsel %vm67, %v65, 0
    %74 = vmatprep.subr.mxu0 0.0
    %75 = vmatpush1.msra.mxu0 0.0
    %76 = vmatprep.subr.mxu0 0.0
    %77 = vmatpush1.msra.mxu0 0.0
    %78 = vmatprep.subr.mxu0 0.0
    %79 = vmatpush1.msra.mxu0 0.0
    %80 = vmatprep.subr.mxu0 0.0
    %81 = vmatpush1.msra.mxu0 0.0
    %82 = vmatprep.subr.mxu0 0.0
    %83 = vmatpush1.msra.mxu0 0.0
    %84 = vmatprep.subr.mxu0 0.0
    %85 = vmatpush1.msra.mxu0 0.0
    %86 = vmatprep.subr.mxu0 0.0
    %87 = vmatpush1.msra.mxu0 0.0
    %88 = vmatprep.subr.mxu0 0.0
    %89 = vmatpush1.msra.mxu0 0.0
    %90 = vmatprep.subr.mxu0 0.0
    %91 = vmatpush1.msra.mxu0 0.0
    %92 = vmatprep.subr.mxu0 0.0
    %93 = vmatpush1.msra.mxu0 0.0
    %94 = vmatprep.subr.mxu0 0.0
    %95 = vmatpush1.msra.mxu0 0.0
    %96 = vmatprep.subr.mxu0 0.0
    %97 = vmatpush1.msra.mxu0 0.0
    %98 = vmatprep.subr.mxu0 0.0
    %99 = vmatpush1.msra.mxu0 0.0
    %100 = vmatprep.subr.mxu0 0.0
    %101 = vmatpush1.msra.mxu0 0.0
    %102 = vmatprep.subr.mxu0 0.0
    %103 = vmatpush1.msra.mxu0 0.0
    %104 = vmatprep.subr.mxu0 0.0
    %105 = vmatpush1.msra.mxu0 %v66
    %106 = vmatprep.subr.mxu0 0.0
    %107 = vmatpush2.msra.mxu0 0.0
    %108 = vmatprep.subr.mxu0 0.0
    %109 = vmatpush2.msra.mxu0 0.0
    %110 = vmatprep.subr.mxu0 0.0
    %111 = vmatpush2.msra.mxu0 0.0
    %112 = vmatprep.subr.mxu0 0.0
    %113 = vmatpush2.msra.mxu0 0.0
    %114 = vmatprep.subr.mxu0 0.0
    %115 = vmatpush2.msra.mxu0 0.0
    %116 = vmatprep.subr.mxu0 0.0
    %117 = vmatpush2.msra.mxu0 0.0
    %118 = vmatprep.subr.mxu0 0.0
    %119 = vmatpush2.msra.mxu0 0.0
    %120 = vmatprep.subr.mxu0 0.0
    %121 = vmatpush2.msra.mxu0 0.0
    %122 = vmatprep.subr.mxu0 0.0
    %123 = vmatpush2.msra.mxu0 0.0
    %124 = vmatprep.subr.mxu0 0.0
    %125 = vmatpush2.msra.mxu0 0.0
    %126 = vmatprep.subr.mxu0 0.0
    %127 = vmatpush2.msra.mxu0 0.0
    %128 = vmatprep.subr.mxu0 0.0
    %129 = vmatpush2.msra.mxu0 0.0
    %130 = vmatprep.subr.mxu0 0.0
    %131 = vmatpush2.msra.mxu0 0.0
    %132 = vmatprep.subr.mxu0 0.0
    %133 = vmatpush2.msra.mxu0 0.0
    %134 = vmatprep.subr.mxu0 0.0
    %135 = vmatpush2.msra.mxu0 0.0
    %136 = vmatprep.subr.mxu0 0.0
    %137 = vmatpush2.msra.mxu0 0.0
    %138 = vmatprep.mubr.f32.mxu0 0.0
    %139 = vmatmul.mubr.f32.gmra.mxu0 %v69
    %v140 = vpop.f32.mrf.mxu0
    %v141 = vadd.f32 0.0, %v140
    %v142 = vpop.f32.mrf.mxu0
    %143 = vmatprep.mubr.f32.mxu0 0.0
    %144 = vmatmul.mubr.f32.gmra.mxu0 %v72
    %v145 = vpop.f32.mrf.mxu0
    %v146 = vadd.f32 0.0, %v145
    %v147 = vpop.f32.mrf.mxu0
    %148 = vdwg.mxu0
    %v149 = vld [vmem:[#allocation2] sm:$0xff]
    %v150 = vld [vmem:[#allocation2 + $0x8] sm:$0xff]
    %v151 = vld [vmem:[#allocation2 + $0x10] sm:$0xff]
    %v152 = vld [vmem:[#allocation2 + $0x18] sm:$0xff]
    %v153 = vld [vmem:[%s3] sm:$0x1]
    %v155 = vlaneseq
    %v156 = vshrl.u32 %v155, 7
    %v157 = vsub.s32 0, %v156
    %v158 = vrot.slane %v153, %v157
    %vm160 = vcmask 261120
    %v162 = vsel %vm160, %v141, 0
    %v165 = vsel %vm160, %v146, 0
    %167 = vmatprep.subr.mxu0 0.0
    %168 = vmatpush1.msra.mxu0 0.0
    %169 = vmatprep.subr.mxu0 0.0
    %170 = vmatpush1.msra.mxu0 0.0
    %171 = vmatprep.subr.mxu0 0.0
    %172 = vmatpush1.msra.mxu0 0.0
    %173 = vmatprep.subr.mxu0 0.0
    %174 = vmatpush1.msra.mxu0 0.0
    %175 = vmatprep.subr.mxu0 0.0
    %176 = vmatpush1.msra.mxu0 0.0
    %177 = vmatprep.subr.mxu0 0.0
    %178 = vmatpush1.msra.mxu0 0.0
    %179 = vmatprep.subr.mxu0 0.0
    %180 = vmatpush1.msra.mxu0 0.0
    %181 = vmatprep.subr.mxu0 0.0
    %182 = vmatpush1.msra.mxu0 0.0
    %183 = vmatprep.subr.mxu0 0.0
    %184 = vmatpush1.msra.mxu0 0.0
    %185 = vmatprep.subr.mxu0 0.0
    %186 = vmatpush1.msra.mxu0 0.0
    %187 = vmatprep.subr.mxu0 0.0
    %188 = vmatpush1.msra.mxu0 0.0
    %189 = vmatprep.subr.mxu0 0.0
    %190 = vmatpush1.msra.mxu0 0.0
    %191 = vmatprep.subr.mxu0 0.0
    %192 = vmatpush1.msra.mxu0 %v152
    %193 = vmatprep.subr.mxu0 0.0
    %194 = vmatpush1.msra.mxu0 %v151
    %195 = vmatprep.subr.mxu0 0.0
    %196 = vmatpush1.msra.mxu0 %v150
    %197 = vmatprep.subr.mxu0 0.0
    %198 = vmatpush1.msra.mxu0 %v149
    %199 = vmatprep.subr.mxu0 0.0
    %200 = vmatpush2.msra.mxu0 0.0
    %201 = vmatprep.subr.mxu0 0.0
    %202 = vmatpush2.msra.mxu0 0.0
    %203 = vmatprep.subr.mxu0 0.0
    %204 = vmatpush2.msra.mxu0 0.0
    %205 = vmatprep.subr.mxu0 0.0
    %206 = vmatpush2.msra.mxu0 0.0
    %207 = vmatprep.subr.mxu0 0.0
    %208 = vmatpush2.msra.mxu0 0.0
    %209 = vmatprep.subr.mxu0 0.0
    %210 = vmatpush2.msra.mxu0 0.0
    %211 = vmatprep.subr.mxu0 0.0
    %212 = vmatpush2.msra.mxu0 0.0
    %213 = vmatprep.subr.mxu0 0.0
    %214 = vmatpush2.msra.mxu0 0.0
    %215 = vmatprep.subr.mxu0 0.0
    %216 = vmatpush2.msra.mxu0 0.0
    %217 = vmatprep.subr.mxu0 0.0
    %218 = vmatpush2.msra.mxu0 0.0
    %219 = vmatprep.subr.mxu0 0.0
    %220 = vmatpush2.msra.mxu0 0.0
    %221 = vmatprep.subr.mxu0 0.0
    %222 = vmatpush2.msra.mxu0 0.0
    %223 = vmatprep.subr.mxu0 0.0
    %224 = vmatpush2.msra.mxu0 0.0
    %225 = vmatprep.subr.mxu0 0.0
    %226 = vmatpush2.msra.mxu0 0.0
    %227 = vmatprep.subr.mxu0 0.0
    %228 = vmatpush2.msra.mxu0 0.0
    %229 = vmatprep.subr.mxu0 0.0
    %230 = vmatpush2.msra.mxu0 0.0
    %231 = vmatprep.mubr.f32.mxu0 0.0
    %232 = vmatmul.mubr.f32.gmra.mxu0 %v162
    %v233 = vpop.f32.mrf.mxu0
    %v234 = vadd.f32 %v158, %v233
    %v235 = vpop.f32.mrf.mxu0
    %236 = vmatprep.mubr.f32.mxu0 0.0
    %237 = vmatmul.mubr.f32.gmra.mxu0 %v165
    %v238 = vpop.f32.mrf.mxu0
    %v239 = vadd.f32 %v158, %v238
    %v240 = vpop.f32.mrf.mxu0
    %241 = vdwg.mxu0
    %v242 = vmax.f32 %v234, 0.0
    %v243 = vmax.f32 %v239, 0.0
    %v244 = vld [vmem:[#allocation5] sm:$0xff]
    %v245 = vld [vmem:[#allocation5 + $0x8] sm:$0xff]
    %v246 = vld [vmem:[#allocation5 + $0x10] sm:$0xff]
    %v247 = vld [vmem:[#allocation5 + $0x18] sm:$0xff]
    %v248 = vld [vmem:[#allocation5 + $0x20] sm:$0xff]
    %v249 = vld [vmem:[#allocation5 + $0x28] sm:$0xff]
    %v250 = vld [vmem:[#allocation5 + $0x30] sm:$0xff]
    %v251 = vld [vmem:[#allocation5 + $0x38] sm:$0xff]
    %v252 = vld [vmem:[%s5] sm:$0x1]
    %v254 = vlaneseq
    %v255 = vshrl.u32 %v254, 7
    %v256 = vsub.s32 0, %v255
    %v257 = vrot.slane %v252, %v256
    %vm259 = vcmask 523264
    %v261 = vsel %vm259, %v242, 0
    %v264 = vsel %vm259, %v243, 0
    %266 = vmatprep.subr.mxu0 0.0
    %267 = vmatpush1.msra.mxu0 0.0
    %268 = vmatprep.subr.mxu0 0.0
    %269 = vmatpush1.msra.mxu0 0.0
    %270 = vmatprep.subr.mxu0 0.0
    %271 = vmatpush1.msra.mxu0 0.0
    %272 = vmatprep.subr.mxu0 0.0
    %273 = vmatpush1.msra.mxu0 0.0
    %274 = vmatprep.subr.mxu0 0.0
    %275 = vmatpush1.msra.mxu0 0.0
    %276 = vmatprep.subr.mxu0 0.0
    %277 = vmatpush1.msra.mxu0 0.0
    %278 = vmatprep.subr.mxu0 0.0
    %279 = vmatpush1.msra.mxu0 0.0
    %280 = vmatprep.subr.mxu0 0.0
    %281 = vmatpush1.msra.mxu0 0.0
    %282 = vmatprep.subr.mxu0 0.0
    %283 = vmatpush1.msra.mxu0 %v251
    %284 = vmatprep.subr.mxu0 0.0
    %285 = vmatpush1.msra.mxu0 %v250
    %286 = vmatprep.subr.mxu0 0.0
    %287 = vmatpush1.msra.mxu0 %v249
    %288 = vmatprep.subr.mxu0 0.0
    %289 = vmatpush1.msra.mxu0 %v248
    %290 = vmatprep.subr.mxu0 0.0
    %291 = vmatpush1.msra.mxu0 %v247
    %292 = vmatprep.subr.mxu0 0.0
    %293 = vmatpush1.msra.mxu0 %v246
    %294 = vmatprep.subr.mxu0 0.0
    %295 = vmatpush1.msra.mxu0 %v245
    %296 = vmatprep.subr.mxu0 0.0
    %297 = vmatpush1.msra.mxu0 %v244
    %298 = vmatprep.subr.mxu0 0.0
    %299 = vmatpush2.msra.mxu0 0.0
    %300 = vmatprep.subr.mxu0 0.0
    %301 = vmatpush2.msra.mxu0 0.0
    %302 = vmatprep.subr.mxu0 0.0
    %303 = vmatpush2.msra.mxu0 0.0
    %304 = vmatprep.subr.mxu0 0.0
    %305 = vmatpush2.msra.mxu0 0.0
    %306 = vmatprep.subr.mxu0 0.0
    %307 = vmatpush2.msra.mxu0 0.0
    %308 = vmatprep.subr.mxu0 0.0
    %309 = vmatpush2.msra.mxu0 0.0
    %310 = vmatprep.subr.mxu0 0.0
    %311 = vmatpush2.msra.mxu0 0.0
    %312 = vmatprep.subr.mxu0 0.0
    %313 = vmatpush2.msra.mxu0 0.0
    %314 = vmatprep.subr.mxu0 0.0
    %315 = vmatpush2.msra.mxu0 0.0
    %316 = vmatprep.subr.mxu0 0.0
    %317 = vmatpush2.msra.mxu0 0.0
    %318 = vmatprep.subr.mxu0 0.0
    %319 = vmatpush2.msra.mxu0 0.0
    %320 = vmatprep.subr.mxu0 0.0
    %321 = vmatpush2.msra.mxu0 0.0
    %322 = vmatprep.subr.mxu0 0.0
    %323 = vmatpush2.msra.mxu0 0.0
    %324 = vmatprep.subr.mxu0 0.0
    %325 = vmatpush2.msra.mxu0 0.0
    %326 = vmatprep.subr.mxu0 0.0
    %327 = vmatpush2.msra.mxu0 0.0
    %328 = vmatprep.subr.mxu0 0.0
    %329 = vmatpush2.msra.mxu0 0.0
    %330 = vmatprep.mubr.f32.mxu0 0.0
    %331 = vmatmul.mubr.f32.gmra.mxu0 %v261
    %v332 = vpop.f32.mrf.mxu0
    %v333 = vadd.f32 %v257, %v332
    %v334 = vpop.f32.mrf.mxu0
    %335 = vmatprep.mubr.f32.mxu0 0.0
    %336 = vmatmul.mubr.f32.gmra.mxu0 %v264
    %v337 = vpop.f32.mrf.mxu0
    %v338 = vadd.f32 %v257, %v337
    %v339 = vpop.f32.mrf.mxu0
    %340 = vdwg.mxu0
    %341 = vst [vmem:[#allocation7] sm:$0xff] %v333
    %342 = vst [vmem:[#allocation7 + $0x8] sm:$0xff] %v338
    // Predicated region
    $region34: #{tpu_custom_call.1} parent=1 // pred_check
      _
    $region35: #{tpu_custom_call.1} parent=1 // pred_check_branch
      %344 = sbr.rel (0) target = $region37
    $region36: #{tpu_custom_call.1} parent=1 // pred_region
      %s346 = ssub.s32 256, 256
      %347 = vsyncadd [#allocation4], %s346
      %s348 = sshll.u32 [#allocation7], 4
      %s349 = int_to_ptr.vmem [resolvable:$true] %s348
      %354 = dma.vmem_to_hbm [thread:$0]  %s349, 256, %s6, [#allocation4], 128, 128, 8
    $region37: #{tpu_custom_call.1} parent=1 // pred_fallthru
      _
    // Predicated region
    $region38: #{tpu_custom_call.1} parent=1 // pred_check
      _
    $region39: #{tpu_custom_call.1} parent=1 // pred_check_branch
      %356 = sbr.rel (0) target = $region41
    $region40: #{tpu_custom_call.1} parent=1 // pred_region
      %357 = dma.done [#allocation4], 256
    $region41: #{tpu_custom_call.1} parent=1 // pred_fallthru
      _
    %358 = vsyncpa [#allocation3], 1
    %359 = vsyncpa [#allocation6], 1
    %360 = vsyncpa [#allocation4], 1

</llo_original>
